<compile_context>
chip_gen: v6e
topology: v6e:2x2x1
jax: 0.10.0
libtpu: 0.0.40
codegen_flags: <defaults>
</compile_context>

<pallas_src>
from functools import partial

import jax
import jax.numpy as jnp
from jax.experimental import pallas as pl
from jax.experimental.pallas import tpu as pltpu


def _lora_self_output_kernel(x_ref, res_ref, w_ref, p_ref, o_ref, *, eps, inv_h):
    # x_ref:   (tm, H)  tile of flattened hidden_states
    # res_ref: (tm, H)  tile of flattened input_tensor (residual)
    # w_ref:   (H, H)   dense weight, pre-transposed to (in, out)
    # p_ref:   (3, H)   packed [bias; gamma; beta]

    # MXU matmul in the native input dtype; f32 accumulation.
    y = jnp.dot(x_ref[...], w_ref[...], preferred_element_type=jnp.float32)

    bias = p_ref[0:1, :].astype(jnp.float32)
    gamma = p_ref[1:2, :].astype(jnp.float32)
    beta = p_ref[2:3, :].astype(jnp.float32)

    # bias + dropout(eval == identity) + residual add, all in f32.
    y = y + bias + res_ref[...].astype(jnp.float32)

    # Single-pass LayerNorm stats over the hidden (last) axis: the two
    # reductions are independent (can dual-issue on the XLUs); no divides.
    s1 = jnp.sum(y, axis=-1, keepdims=True)
    s2 = jnp.sum(y * y, axis=-1, keepdims=True)
    mean = s1 * inv_h
    var = s2 * inv_h - mean * mean
    inv = jax.lax.rsqrt(var + eps)

    out = (y - mean) * inv * gamma + beta

    # Single dtype conversion at the final (lane-dense) store.
    o_ref[...] = out.astype(o_ref.dtype)


def prepare_lora_self_output_params(weight, bias, gamma, beta):
    """One-time parameter preparation (do NOT call per forward).

    weight: (H, H) in nn.Linear (out, in) layout; bias/gamma/beta: (H,).
    Returns (weight_t, packed_params) with weight_t (in, out) and
    packed_params (3, H) = [bias; gamma; beta].
    """
    w_t = jnp.asarray(weight).T
    packed = jnp.stack(
        [jnp.asarray(bias), jnp.asarray(gamma), jnp.asarray(beta)], axis=0)
    return w_t, packed


def _pick_row_tile(m, row_tile):
    if m <= row_tile:
        return m  # single block == full dim (allowed regardless of 8-multiple)
    tm = row_tile
    # Keep >=4 grid steps when possible so the "parallel" axis can split
    # across TensorCores (v7x) and the pipeline has depth; floor at 128 rows.
    while tm > 128 and (m + tm - 1) // tm < 4:
        tm //= 2
    return tm


def _vmem_capacity_bytes():
    try:
        return int(pltpu.get_tpu_info().vmem_capacity_bytes)
    except Exception:
        # Unknown -> assume the smallest generation (v7x: 64 MiB per TC).
        return 64 * 1024 * 1024


def lora_self_output(hidden_states, input_tensor, weight_t, packed_params,
                     *, eps=1e-12, row_tile=512, vmem_limit_bytes=None):
    """Fused dense + residual + LayerNorm.

    hidden_states, input_tensor: [B, S, H];
    weight_t: [H, H] pre-transposed to (in, out) (see
    prepare_lora_self_output_params); packed_params: [3, H] = bias/gamma/beta.
    """
    B, S, H = hidden_states.shape
    M = B * S
    out_dtype = hidden_states.dtype

    x2d = hidden_states.reshape(M, H)
    r2d = input_tensor.reshape(M, H)

    tm = _pick_row_tile(M, row_tile)
    num_m = (M + tm - 1) // tm        # ragged edge handled by masked writes
    grid = (num_m,)

    itemsize = jnp.dtype(out_dtype).itemsize
    w_itemsize = jnp.dtype(weight_t.dtype).itemsize
    if vmem_limit_bytes is None:
        needed = (2 * H * H * w_itemsize        # resident weight (double-buf)
                  + 2 * 2 * tm * H * itemsize   # x, res double-buffered
                  + 2 * tm * H * itemsize       # out double-buffered
                  + 2 * 3 * H * 4               # packed params
                  + 3 * tm * H * 4)             # f32 intermediates (y, out, tmp)
        cap = int(0.75 * _vmem_capacity_bytes())
        vmem_limit_bytes = int(min(max(int(1.25 * needed), 32 * 1024 * 1024),
                                   cap))

    cost = pl.CostEstimate(
        flops=2 * M * H * H,
        transcendentals=0,
        bytes_accessed=(3 * M * H) * itemsize + H * H * w_itemsize + 3 * H * 4,
    )

    kernel = partial(_lora_self_output_kernel, eps=float(eps), inv_h=1.0 / H)

    out = pl.pallas_call(
        kernel,
        out_shape=jax.ShapeDtypeStruct((M, H), out_dtype),
        grid_spec=pltpu.PrefetchScalarGridSpec(
            num_scalar_prefetch=0,
            grid=grid,
            in_specs=[
                pl.BlockSpec((tm, H), lambda i: (i, 0)),   # x tile
                pl.BlockSpec((tm, H), lambda i: (i, 0)),   # residual tile
                pl.BlockSpec((H, H), lambda i: (0, 0)),    # weight (resident)
                pl.BlockSpec((3, H), lambda i: (0, 0)),    # bias/gamma/beta
            ],
            out_specs=pl.BlockSpec((tm, H), lambda i: (i, 0)),
        ),
        compiler_params=pltpu.CompilerParams(
            dimension_semantics=("parallel",),
            vmem_limit_bytes=vmem_limit_bytes),
        cost_estimate=cost,
    )(x2d, r2d, weight_t, packed_params)

    return out.reshape(B, S, H)


def _reference(hidden_states, input_tensor, weight, bias, gamma, beta, eps):
    y = jnp.einsum("bsh,oh->bso", hidden_states, weight) + bias
    y = y + input_tensor
    mean = jnp.mean(y, axis=-1, keepdims=True)
    var = jnp.mean((y - mean) ** 2, axis=-1, keepdims=True)
    return (y - mean) / jnp.sqrt(var + eps) * gamma + beta


if __name__ == "__main__":
    # config: hidden_size=32, layer_norm_eps=1e-12, hidden_dropout_prob=0.1 (eval)
    B, S, H = 2, 8, 32
    eps = 1e-12

    key = jax.random.PRNGKey(0)
    k_hs, k_in, k_w, k_b, k_g, k_be = jax.random.split(key, 6)

    hidden_states = jax.random.normal(k_hs, (B, S, H), dtype=jnp.float32)
    input_tensor = jax.random.normal(k_in, (B, S, H), dtype=jnp.float32)

    # deterministic parameter init (nn.Linear-like scale); weight is (out, in)
    bound = 1.0 / (H ** 0.5)
    weight = jax.random.uniform(k_w, (H, H), minval=-bound, maxval=bound,
                                dtype=jnp.float32)
    bias = jax.random.uniform(k_b, (H,), minval=-bound, maxval=bound,
                              dtype=jnp.float32)
    gamma = jnp.ones((H,), dtype=jnp.float32) + 0.01 * jax.random.normal(k_g, (H,))
    beta = 0.01 * jax.random.normal(k_be, (H,), dtype=jnp.float32)

    # One-time parameter prep (transpose + packing) outside the forward path.
    w_t, packed = prepare_lora_self_output_params(weight, bias, gamma, beta)

    out = lora_self_output(hidden_states, input_tensor, w_t, packed, eps=eps)
    out = jax.block_until_ready(out)

    ref = _reference(hidden_states, input_tensor, weight, bias, gamma, beta, eps)
    assert out.shape == (B, S, H)
    assert jnp.allclose(out, ref, atol=1e-4, rtol=1e-4), "mismatch vs reference"

    print("KERNEL_OK")
</pallas_src>

<mosaic_0001>
module attributes {stable_mosaic.version = 11 : i64} {
  func.func @_lora_self_output_kernel(%arg0: i32, %arg1: memref<16x32xf32, #tpu.memory_space<vmem>>, %arg2: memref<16x32xf32, #tpu.memory_space<vmem>>, %arg3: memref<32x32xf32, #tpu.memory_space<vmem>>, %arg4: memref<3x32xf32, #tpu.memory_space<vmem>>, %arg5: memref<16x32xf32, #tpu.memory_space<vmem>>) attributes {dimension_semantics = [#tpu.dimension_semantics<parallel>], iteration_bounds = array<i64: 1>, scalar_prefetch = 0 : i64, scratch_operands = 0 : i64, tpu.core_type = #tpu.core_type<tc>, window_params = [{transform_indices = @transform_0, window_bounds = array<i64: 16, 32>}, {transform_indices = @transform_1, window_bounds = array<i64: 16, 32>}, {pipeline_mode = #tpu.pipeline_mode<synchronous>, transform_indices = @transform_2, window_bounds = array<i64: 32, 32>}, {pipeline_mode = #tpu.pipeline_mode<synchronous>, transform_indices = @transform_3, window_bounds = array<i64: 3, 32>}, {transform_indices = @transform_4, window_bounds = array<i64: 16, 32>}]} {
    %c0 = arith.constant 0 : index
    %c0_0 = arith.constant 0 : index
    %0 = vector.load %arg1[%c0, %c0_0] : memref<16x32xf32, #tpu.memory_space<vmem>>, vector<16x32xf32>
    %c0_1 = arith.constant 0 : index
    %c0_2 = arith.constant 0 : index
    %1 = vector.load %arg3[%c0_1, %c0_2] : memref<32x32xf32, #tpu.memory_space<vmem>>, vector<32x32xf32>
    %cst = arith.constant dense<0.000000e+00> : vector<16x32xf32>
    %2 = tpu.matmul %0, %1, %cst {dimension_numbers = #tpu.dot_dimension_numbers<[1], [0], [0], [1], [0, 0, 1, 1], [], []>} : vector<16x32xf32>, vector<32x32xf32>, vector<16x32xf32> -> vector<16x32xf32>
    %c0_3 = arith.constant 0 : index
    %c0_4 = arith.constant 0 : index
    %3 = vector.load %arg4[%c0_3, %c0_4] : memref<3x32xf32, #tpu.memory_space<vmem>>, vector<1x32xf32>
    %c1 = arith.constant 1 : index
    %c0_5 = arith.constant 0 : index
    %4 = vector.load %arg4[%c1, %c0_5] : memref<3x32xf32, #tpu.memory_space<vmem>>, vector<1x32xf32>
    %c2 = arith.constant 2 : index
    %c0_6 = arith.constant 0 : index
    %5 = vector.load %arg4[%c2, %c0_6] : memref<3x32xf32, #tpu.memory_space<vmem>>, vector<1x32xf32>
    %6 = vector.broadcast %3 : vector<1x32xf32> to vector<16x32xf32>
    %7 = arith.addf %2, %6 : vector<16x32xf32>
    %c0_7 = arith.constant 0 : index
    %c0_8 = arith.constant 0 : index
    %8 = vector.load %arg2[%c0_7, %c0_8] : memref<16x32xf32, #tpu.memory_space<vmem>>, vector<16x32xf32>
    %9 = arith.addf %7, %8 : vector<16x32xf32>
    %cst_9 = arith.constant dense<0.000000e+00> : vector<16xf32>
    %10 = vector.multi_reduction <add>, %9, %cst_9 [1] : vector<16x32xf32> to vector<16xf32>
    %11 = vector.shape_cast %10 : vector<16xf32> to vector<16x1xf32>
    %12 = arith.mulf %9, %9 : vector<16x32xf32>
    %cst_10 = arith.constant dense<0.000000e+00> : vector<16xf32>
    %13 = vector.multi_reduction <add>, %12, %cst_10 [1] : vector<16x32xf32> to vector<16xf32>
    %14 = vector.shape_cast %13 : vector<16xf32> to vector<16x1xf32>
    %cst_11 = arith.constant 3.125000e-02 : f32
    %15 = vector.broadcast %cst_11 : f32 to vector<16x1xf32>
    %16 = arith.mulf %11, %15 : vector<16x1xf32>
    %cst_12 = arith.constant 3.125000e-02 : f32
    %17 = vector.broadcast %cst_12 : f32 to vector<16x1xf32>
    %18 = arith.mulf %14, %17 : vector<16x1xf32>
    %19 = arith.mulf %16, %16 : vector<16x1xf32>
    %20 = arith.subf %18, %19 : vector<16x1xf32>
    %cst_13 = arith.constant 9.99999996E-13 : f32
    %21 = vector.broadcast %cst_13 : f32 to vector<16x1xf32>
    %22 = arith.addf %20, %21 : vector<16x1xf32>
    %23 = math.rsqrt %22 : vector<16x1xf32>
    %24 = vector.broadcast %16 : vector<16x1xf32> to vector<16x32xf32>
    %25 = arith.subf %9, %24 : vector<16x32xf32>
    %26 = vector.broadcast %23 : vector<16x1xf32> to vector<16x32xf32>
    %27 = arith.mulf %25, %26 : vector<16x32xf32>
    %28 = vector.broadcast %4 : vector<1x32xf32> to vector<16x32xf32>
    %29 = arith.mulf %27, %28 : vector<16x32xf32>
    %30 = vector.broadcast %5 : vector<1x32xf32> to vector<16x32xf32>
    %31 = arith.addf %29, %30 : vector<16x32xf32>
    %c0_14 = arith.constant 0 : index
    %c0_15 = arith.constant 0 : index
    %32 = vector.load %arg5[%c0_14, %c0_15] : memref<16x32xf32, #tpu.memory_space<vmem>>, vector<16x32xf32>
    tpu.vector_store %arg5[%c0_14, %c0_15], %31 {strides = array<i32>} : memref<16x32xf32, #tpu.memory_space<vmem>>, vector<16x32xf32>,
    return
  }
  func.func @transform_0(%arg0: i32) -> (i32, i32) {
    %c0_i32 = arith.constant 0 : i32
    %c0_i32_0 = arith.constant 0 : i32
    return %arg0, %c0_i32 : i32, i32
  }
  func.func @transform_1(%arg0: i32) -> (i32, i32) {
    %c0_i32 = arith.constant 0 : i32
    %c0_i32_0 = arith.constant 0 : i32
    return %arg0, %c0_i32 : i32, i32
  }
  func.func @transform_2(%arg0: i32) -> (i32, i32) {
    %c0_i32 = arith.constant 0 : i32
    %c0_i32_0 = arith.constant 0 : i32
    %c0_i32_1 = arith.constant 0 : i32
    return %c0_i32, %c0_i32_0 : i32, i32
  }
  func.func @transform_3(%arg0: i32) -> (i32, i32) {
    %c0_i32 = arith.constant 0 : i32
    %c0_i32_0 = arith.constant 0 : i32
    %c0_i32_1 = arith.constant 0 : i32
    return %c0_i32, %c0_i32_0 : i32, i32
  }
  func.func @transform_4(%arg0: i32) -> (i32, i32) {
    %c0_i32 = arith.constant 0 : i32
    %c0_i32_0 = arith.constant 0 : i32
    return %arg0, %c0_i32 : i32, i32
  }
}

</mosaic_0001>

<llo_original>
// kernel: tpu_custom_call.1
$region0: #{tpu_custom_call.1}
  #allocation0 [shape = 'u32[]', space=smem, size = 0x4, offset = 0x4, fixed_abs, tag = 'smem constant byte address 0x4 - core index']
  #allocation1 [shape = 'u32[144,128]{1,0:T(1,128)}', space=vmem, size = 0x12000, scoped, tag = 'internal scratch']
  %s0 = inlined_call_operand.hbm [shape: f32[16,32], index: 0, kind: input, shape index: {}]
  %s1 = inlined_call_operand.hbm [shape: f32[16,32], index: 1, kind: input, shape index: {}]
  %s2 = inlined_call_operand.hbm [shape: f32[32,32], index: 2, kind: input, shape index: {}]
  %s3 = inlined_call_operand.vmem [shape: f32[3,32], index: 3, kind: input, shape index: {}]
  %s4 = inlined_call_operand.hbm [shape: f32[16,32], index: 4, kind: output, shape index: {}]
  %s5 = sld [smem:[#allocation0]]
  $region38: #{tpu_custom_call.1} parent=0
    _
  %s7 = ssub.s32 1, %s5
  %s8 = scalar_select 0, %s7, %s5
  $region1: #{tpu_custom_call.1} parent=0
    #allocation2 [shape = 'u8[8192]{0}', space=vmem, size = 0x2000, scoped, tag = 'input window, operand 0, single buffered']
    #allocation3 [shape = 's32[1]{0}', space=sflag, size = 0x4, scoped, tag = 'scoped memory for tpu_custom_call.1']
    #allocation4 [shape = 's32[1]{0}', space=sflag, size = 0x4, scoped, tag = 'scoped memory for tpu_custom_call.1']
    #allocation5 [shape = 'u8[8192]{0}', space=vmem, size = 0x2000, scoped, tag = 'input window, operand 1, single buffered']
    #allocation6 [shape = 's32[1]{0}', space=sflag, size = 0x4, scoped, tag = 'scoped memory for tpu_custom_call.1']
    #allocation7 [shape = 'u8[16384]{0}', space=vmem, size = 0x4000, scoped, tag = 'input window, operand 2, single buffered']
    #allocation8 [shape = 'u8[8192]{0}', space=vmem, size = 0x2000, scoped, tag = 'output window, operand 0, single buffered']
    %9 = vsyncpa [#allocation3], 0
    %10 = vsyncpa [#allocation6], 0
    %11 = vsyncpa [#allocation4], 0
    // Predicated region
    $region2: #{tpu_custom_call.1} parent=1 // pred_check
      _
    $region3: #{tpu_custom_call.1} parent=1 // pred_check_branch
      %13 = sbr.rel (0) target = $region5
    $region4: #{tpu_custom_call.1} parent=1 // pred_region
      %s15 = ssub.s32 256, 256
      %16 = vsyncadd [#allocation3], %s15
      %s17 = sshll.u32 [#allocation2], 4
      %s18 = int_to_ptr.vmem [resolvable:$true] %s17
      %23 = dma.hbm_to_vmem [thread:$0]  %s0, 256, %s18, [#allocation3], 128, 128, 8
    $region5: #{tpu_custom_call.1} parent=1 // pred_fallthru
      _
    // Predicated region
    $region6: #{tpu_custom_call.1} parent=1 // pred_check
      _
    $region7: #{tpu_custom_call.1} parent=1 // pred_check_branch
      %25 = sbr.rel (0) target = $region9
    $region8: #{tpu_custom_call.1} parent=1 // pred_region
      %s27 = ssub.s32 256, 256
      %28 = vsyncadd [#allocation6], %s27
      %s29 = sshll.u32 [#allocation5], 4
      %s30 = int_to_ptr.vmem [resolvable:$true] %s29
      %35 = dma.hbm_to_vmem [thread:$0]  %s1, 256, %s30, [#allocation6], 128, 128, 8
    $region9: #{tpu_custom_call.1} parent=1 // pred_fallthru
      _
    // Predicated region
    $region10: #{tpu_custom_call.1} parent=1 // pred_check
      _
    $region11: #{tpu_custom_call.1} parent=1 // pred_check_branch
      %37 = sbr.rel (0) target = $region13
    $region12: #{tpu_custom_call.1} parent=1 // pred_region
      %s39 = ssub.s32 512, 512
      %40 = vsyncadd [#allocation6], %s39
      %s41 = sshll.u32 [#allocation7], 4
      %s42 = int_to_ptr.vmem [resolvable:$true] %s41
      %47 = dma.hbm_to_vmem [thread:$0]  %s2, 512, %s42, [#allocation6], 128, 128, 8
    $region13: #{tpu_custom_call.1} parent=1 // pred_fallthru
      _
    // Predicated region
    $region14: #{tpu_custom_call.1} parent=1 // pred_check
      _
    $region15: #{tpu_custom_call.1} parent=1 // pred_check_branch
      %49 = sbr.rel (0) target = $region17
    $region16: #{tpu_custom_call.1} parent=1 // pred_region
      _
    $region17: #{tpu_custom_call.1} parent=1 // pred_fallthru
      _
    // Predicated region
    $region18: #{tpu_custom_call.1} parent=1 // pred_check
      _
    $region19: #{tpu_custom_call.1} parent=1 // pred_check_branch
      %51 = sbr.rel (0) target = $region21
    $region20: #{tpu_custom_call.1} parent=1 // pred_region
      %52 = dma.done [#allocation3], 256
    $region21: #{tpu_custom_call.1} parent=1 // pred_fallthru
      _
    // Predicated region
    $region22: #{tpu_custom_call.1} parent=1 // pred_check
      _
    $region23: #{tpu_custom_call.1} parent=1 // pred_check_branch
      %54 = sbr.rel (0) target = $region25
    $region24: #{tpu_custom_call.1} parent=1 // pred_region
      %55 = dma.done [#allocation6], 256
    $region25: #{tpu_custom_call.1} parent=1 // pred_fallthru
      _
    // Predicated region
    $region26: #{tpu_custom_call.1} parent=1 // pred_check
      _
    $region27: #{tpu_custom_call.1} parent=1 // pred_check_branch
      %57 = sbr.rel (0) target = $region29
    $region28: #{tpu_custom_call.1} parent=1 // pred_region
      %58 = dma.done [#allocation6], 512
    $region29: #{tpu_custom_call.1} parent=1 // pred_fallthru
      _
    %v59 = vld [vmem:[#allocation2] sm:$0xff]
    %v60 = vld [vmem:[#allocation2 + $0x8] sm:$0xff]
    %v61 = vld [vmem:[#allocation7] sm:$0xff]
    %v62 = vld [vmem:[#allocation7 + $0x8] sm:$0xff]
    %v63 = vld [vmem:[#allocation7 + $0x10] sm:$0xff]
    %v64 = vld [vmem:[#allocation7 + $0x18] sm:$0xff]
    %v65 = vld [vmem:[%s3] sm:$0x1]
    %v66 = vld [vmem:[%s3 + $0x1] sm:$0x1]
    %v67 = vld [vmem:[%s3 + $0x2] sm:$0x1]
    %v68 = vlaneseq
    %v69 = vshrl.u32 %v68, 7
    %v70 = vsub.s32 0, %v69
    %v71 = vrot.slane %v65, %v70
    %vm72 = vcmask 261120
    %v74 = vsel %vm72, %v59, 0
    %v77 = vsel %vm72, %v60, 0
    %79 = vmatprep.subr.mxu0 0.0
    %80 = vmatpush1.msra.mxu0 0.0
    %81 = vmatprep.subr.mxu0 0.0
    %82 = vmatpush1.msra.mxu0 0.0
    %83 = vmatprep.subr.mxu0 0.0
    %84 = vmatpush1.msra.mxu0 0.0
    %85 = vmatprep.subr.mxu0 0.0
    %86 = vmatpush1.msra.mxu0 0.0
    %87 = vmatprep.subr.mxu0 0.0
    %88 = vmatpush1.msra.mxu0 0.0
    %89 = vmatprep.subr.mxu0 0.0
    %90 = vmatpush1.msra.mxu0 0.0
    %91 = vmatprep.subr.mxu0 0.0
    %92 = vmatpush1.msra.mxu0 0.0
    %93 = vmatprep.subr.mxu0 0.0
    %94 = vmatpush1.msra.mxu0 0.0
    %95 = vmatprep.subr.mxu0 0.0
    %96 = vmatpush1.msra.mxu0 0.0
    %97 = vmatprep.subr.mxu0 0.0
    %98 = vmatpush1.msra.mxu0 0.0
    %99 = vmatprep.subr.mxu0 0.0
    %100 = vmatpush1.msra.mxu0 0.0
    %101 = vmatprep.subr.mxu0 0.0
    %102 = vmatpush1.msra.mxu0 0.0
    %103 = vmatprep.subr.mxu0 0.0
    %104 = vmatpush1.msra.mxu0 %v64
    %105 = vmatprep.subr.mxu0 0.0
    %106 = vmatpush1.msra.mxu0 %v63
    %107 = vmatprep.subr.mxu0 0.0
    %108 = vmatpush1.msra.mxu0 %v62
    %109 = vmatprep.subr.mxu0 0.0
    %110 = vmatpush1.msra.mxu0 %v61
    %111 = vmatprep.subr.mxu0 0.0
    %112 = vmatpush2.msra.mxu0 0.0
    %113 = vmatprep.subr.mxu0 0.0
    %114 = vmatpush2.msra.mxu0 0.0
    %115 = vmatprep.subr.mxu0 0.0
    %116 = vmatpush2.msra.mxu0 0.0
    %117 = vmatprep.subr.mxu0 0.0
    %118 = vmatpush2.msra.mxu0 0.0
    %119 = vmatprep.subr.mxu0 0.0
    %120 = vmatpush2.msra.mxu0 0.0
    %121 = vmatprep.subr.mxu0 0.0
    %122 = vmatpush2.msra.mxu0 0.0
    %123 = vmatprep.subr.mxu0 0.0
    %124 = vmatpush2.msra.mxu0 0.0
    %125 = vmatprep.subr.mxu0 0.0
    %126 = vmatpush2.msra.mxu0 0.0
    %127 = vmatprep.subr.mxu0 0.0
    %128 = vmatpush2.msra.mxu0 0.0
    %129 = vmatprep.subr.mxu0 0.0
    %130 = vmatpush2.msra.mxu0 0.0
    %131 = vmatprep.subr.mxu0 0.0
    %132 = vmatpush2.msra.mxu0 0.0
    %133 = vmatprep.subr.mxu0 0.0
    %134 = vmatpush2.msra.mxu0 0.0
    %135 = vmatprep.subr.mxu0 0.0
    %136 = vmatpush2.msra.mxu0 0.0
    %137 = vmatprep.subr.mxu0 0.0
    %138 = vmatpush2.msra.mxu0 0.0
    %139 = vmatprep.subr.mxu0 0.0
    %140 = vmatpush2.msra.mxu0 0.0
    %141 = vmatprep.subr.mxu0 0.0
    %142 = vmatpush2.msra.mxu0 0.0
    %143 = vmatprep.mubr.f32.mxu0 0.0
    %144 = vmatmul.mubr.f32.gmra.mxu0 %v74
    %v145 = vpop.f32.mrf.mxu0
    %v146 = vadd.f32 %v71, %v145
    %v147 = vpop.f32.mrf.mxu0
    %148 = vmatprep.mubr.f32.mxu0 0.0
    %149 = vmatmul.mubr.f32.gmra.mxu0 %v77
    %v150 = vpop.f32.mrf.mxu0
    %v151 = vadd.f32 %v71, %v150
    %v152 = vpop.f32.mrf.mxu0
    %153 = vdwg.mxu0
    %v154 = vld [vmem:[#allocation5] sm:$0xff]
    %v155 = vld [vmem:[#allocation5 + $0x8] sm:$0xff]
    %v156 = vadd.f32 %v146, %v154
    %v157 = vadd.f32 %v151, %v155
    %v158 = vsel %vm72, %v156, 0.0
    %159 = vadd.xlane.f32.xlu0 %v158
    %v160 = vpop.xlane.xlu0 %159
    %v161 = vsel %vm72, %v157, 0.0
    %162 = vadd.xlane.f32.xlu0 %v161
    %v163 = vpop.xlane.xlu0 %162
    %v164 = vmul.f32 %v156, %v156
    %v165 = vmul.f32 %v157, %v157
    %v166 = vsel %vm72, %v164, 0.0
    %167 = vadd.xlane.f32.xlu0 %v166
    %v168 = vpop.xlane.xlu0 %167
    %v169 = vsel %vm72, %v165, 0.0
    %170 = vadd.xlane.f32.xlu0 %v169
    %v171 = vpop.xlane.xlu0 %170
    %v172 = vmul.f32 %v160, 0.03125
    %v173 = vmul.f32 %v163, 0.03125
    %v174 = vmul.f32 %v168, 0.03125
    %v175 = vmul.f32 %v171, 0.03125
    %v176 = vmul.f32 %v172, %v172
    %v177 = vmul.f32 %v173, %v173
    %v178 = vsub.f32 %v174, %v176
    %v179 = vsub.f32 %v175, %v177
    %v180 = vadd.f32 %v178, 1e-12
    %v181 = vadd.f32 %v179, 1e-12
    %v182 = vrsqrt.pop %v180
    %v183 = vrsqrt.pop %v181
    %v184 = vsub.f32 %v156, %v172
    %v185 = vsub.f32 %v157, %v173
    %v186 = vmul.f32 %v184, %v182
    %v187 = vmul.f32 %v185, %v183
    %v188 = vlaneseq
    %v189 = vshrl.u32 %v188, 7
    %v190 = vsub.s32 0, %v189
    %v191 = vrot.slane %v66, %v190
    %v192 = vmul.f32 %v186, %v191
    %v193 = vmul.f32 %v187, %v191
    %v194 = vlaneseq
    %v195 = vshrl.u32 %v194, 7
    %v196 = vsub.s32 0, %v195
    %v197 = vrot.slane %v67, %v196
    %v198 = vadd.f32 %v192, %v197
    %v199 = vadd.f32 %v193, %v197
    %200 = vst.msk [vmem:[#allocation8] sm:$0xff] %vm72, %v198
    %201 = vst.msk [vmem:[#allocation8 + $0x8] sm:$0xff] %vm72, %v199
    // Predicated region
    $region30: #{tpu_custom_call.1} parent=1 // pred_check
      _
    $region31: #{tpu_custom_call.1} parent=1 // pred_check_branch
      %203 = sbr.rel (0) target = $region33
    $region32: #{tpu_custom_call.1} parent=1 // pred_region
      %s205 = ssub.s32 256, 256
      %206 = vsyncadd [#allocation4], %s205
      %s207 = sshll.u32 [#allocation8], 4
      %s208 = int_to_ptr.vmem [resolvable:$true] %s207
      %213 = dma.vmem_to_hbm [thread:$0]  %s208, 256, %s4, [#allocation4], 128, 128, 8
    $region33: #{tpu_custom_call.1} parent=1 // pred_fallthru
      _
    // Predicated region
    $region34: #{tpu_custom_call.1} parent=1 // pred_check
      _
    $region35: #{tpu_custom_call.1} parent=1 // pred_check_branch
      %215 = sbr.rel (0) target = $region37
    $region36: #{tpu_custom_call.1} parent=1 // pred_region
      %216 = dma.done [#allocation4], 256
    $region37: #{tpu_custom_call.1} parent=1 // pred_fallthru
      _
    %217 = vsyncpa [#allocation3], 1
    %218 = vsyncpa [#allocation6], 1
    %219 = vsyncpa [#allocation4], 1

</llo_original>
